<compile_context>
chip_gen: v7x
topology: tpu7x:2x2x1
jax: 0.10.0
libtpu: 0.0.40
codegen_flags: <defaults>
</compile_context>

<pallas_src>
import jax
import jax.numpy as jnp
from jax.experimental import pallas as pl
from jax.experimental.pallas import tpu as pltpu


def _round_up(n: int, m: int) -> int:
    return ((n + m - 1) // m) * m


def _discriminator_kernel(x_ref, w1_ref, b1_ref, w2_ref, b2_ref, o_ref):
    """Fused Linear(nx,ndf) -> ReLU -> Linear(ndf,1) on one batch tile.

    x_ref:  (TB, nx)  input tile (bf16 preferred; cast is a fallback no-op)
    w1_ref: (nx, ndf) layer-1 weight, MXU dtype, VMEM-resident
    b1_ref: (1, ndf)  layer-1 bias, f32, VMEM-resident
    w2_ref: (1, ndf)  layer-2 weight row, f32, VMEM-resident
    b2_ref: (1,)      layer-2 bias scalar, SMEM
    o_ref:  (1, TB)   lane-dense output tile (batch on lanes), f32
    """
    # Layer 1 on the MXU: narrow operands, f32 accumulation.
    x = x_ref[...].astype(w1_ref.dtype)  # no-op when producer already feeds bf16
    h = jnp.dot(x, w1_ref[...], preferred_element_type=jnp.float32)
    # Bias + ReLU in f32 on the VPU (v5e-safe).
    h = jnp.maximum(h + b1_ref[...], 0.0)
    # Layer 2, emitted transposed: contract ndf of (1,ndf) with ndf of (TB,ndf)
    # -> (1, TB).  Batch lands on lanes -> unmasked, lane-dense store.
    # (Kept even though it costs an in-kernel transpose: the kernel is DMA-
    #  bound, so the XLU/MXU slots it uses are free filler.)
    y = jax.lax.dot_general(
        w2_ref[...], h,
        dimension_numbers=(((1,), (1,)), ((), ())),
        preferred_element_type=jnp.float32,
    )
    o_ref[...] = y + b2_ref[0]


def discriminator_forward(x, w1, b1, w2, b2, *, block_b=2048,
                          mxu_dtype=jnp.bfloat16,
                          vmem_cap_bytes=64 * 1024 * 1024):
    """Discriminator forward: (B, nx[, 1, 1]) -> (B, 1).

    Equivalent to Linear(nx, ndf) -> ReLU -> Linear(ndf, 1); weights are stored
    transposed relative to torch.nn.Linear so the kernel computes y = x @ W + b.
    Pass x already in bf16 when the producer allows it (halves the dominant
    HBM traffic).  Set vmem_cap_bytes=128<<20 on v5e/v6e for bigger tiles.
    """
    x = x.reshape(x.shape[0], -1)          # == input.view(B, nx)
    B, nx = x.shape
    ndf = w1.shape[1]
    x_item = jnp.dtype(x.dtype).itemsize
    w_item = jnp.dtype(mxu_dtype).itemsize

    # Resident params + double-buffered x/out tiles (Pallas double-buffers).
    resident_bytes = nx * ndf * w_item + 2 * ndf * 4 + 8

    def vmem_usage(b):
        return 2 * (b * nx * x_item + b * 4) + 2 * resident_bytes

    # ---- batch-tile selection (never pads x) ------------------------------
    if B < 256:
        # Single whole-array block: block dims == array dims, always legal.
        blk = B
    else:
        blk = max(128, _round_up(min(int(block_b), B), 128))
        # v7x: guarantee >= 2 grid steps so the "parallel" axis shards across
        # both TensorCores (harmless no-op on single-TC v5e/v6e).
        blk = min(blk, max(128, _round_up(pl.cdiv(B, 2), 128)))
        # Keep tiles within ~60% of the per-core VMEM ceiling.
        budget = int(0.6 * vmem_cap_bytes)
        while blk > 128 and vmem_usage(blk) > budget:
            blk -= 128
    grid = (pl.cdiv(B, blk),)

    vmem_limit = int(min(max(2 * vmem_usage(blk), 32 * 1024 * 1024),
                         int(0.75 * vmem_cap_bytes)))

    # Tiny params: keep VMEM-resident across all grid steps (block (0,0)).
    # Residents' pointless second pipeline buffer costs only ~nx*ndf*w_item
    # bytes here, so the default pipeline depth is left alone.
    w1_m = w1.astype(mxu_dtype)
    b1_2d = b1.reshape(1, ndf).astype(jnp.float32)
    w2_row = w2.reshape(1, ndf).astype(jnp.float32)
    b2_s = b2.reshape(1).astype(jnp.float32)

    cost = pl.CostEstimate(
        flops=2 * B * nx * ndf + 2 * B * ndf + 2 * B * ndf,   # 2 matmuls + bias/relu
        transcendentals=0,
        bytes_accessed=(B * nx * x_item + nx * ndf * w_item
                        + 2 * ndf * 4 + 4 + B * 4),
    )

    out_t = pl.pallas_call(
        _discriminator_kernel,
        out_shape=jax.ShapeDtypeStruct((1, B), jnp.float32),
        grid=grid,
        in_specs=[
            pl.BlockSpec((blk, nx), lambda i: (i, 0)),        # x tile (streamed)
            pl.BlockSpec((nx, ndf), lambda i: (0, 0)),        # w1 (resident)
            pl.BlockSpec((1, ndf), lambda i: (0, 0)),         # b1 (resident)
            pl.BlockSpec((1, ndf), lambda i: (0, 0)),         # w2 (resident)
            pl.BlockSpec(memory_space=pltpu.MemorySpace.SMEM),  # b2 scalar
        ],
        out_specs=pl.BlockSpec((1, blk), lambda i: (0, i)),
        compiler_params=pltpu.CompilerParams(
            dimension_semantics=("parallel",),   # batch tiles are independent
            vmem_limit_bytes=vmem_limit,
        ),
        cost_estimate=cost,
    )(x, w1_m, b1_2d, w2_row, b2_s)

    # (1, B) -> (B, 1): contiguous reshape, no transpose, no slicing copy.
    return out_t.reshape(B, 1)


def init_params(key, nx, ndf):
    """Deterministic synthetic parameters (shapes match the nn.Linear layers)."""
    k1, k2, k3, k4 = jax.random.split(key, 4)
    # torch.nn.Linear stores (out, in); we store the transpose for x @ W.
    bound1 = 1.0 / (nx ** 0.5)
    bound2 = 1.0 / (ndf ** 0.5)
    w1 = jax.random.uniform(k1, (nx, ndf), jnp.float32, -bound1, bound1)
    b1 = jax.random.uniform(k2, (ndf,), jnp.float32, -bound1, bound1)
    w2 = jax.random.uniform(k3, (ndf, 1), jnp.float32, -bound2, bound2)
    b2 = jax.random.uniform(k4, (1,), jnp.float32, -bound2, bound2)
    return w1, b1, w2, b2


def _reference(x, w1, b1, w2, b2):
    hp = jax.lax.Precision.HIGHEST
    h = jnp.maximum(jnp.dot(x.astype(jnp.float32), w1, precision=hp) + b1, 0.0)
    return jnp.dot(h, w2.reshape(-1, 1), precision=hp) + b2.reshape(1, 1)


if __name__ == "__main__":
    key = jax.random.PRNGKey(0)
    kx, kp, kx2 = jax.random.split(key, 3)

    # Small shapes consistent with the module: batch=8, nx=32, ndf=64.
    B, nx, ndf = 8, 32, 64
    x = jax.random.normal(kx, (B, nx), dtype=jnp.float32)
    w1, b1, w2, b2 = init_params(kp, nx, ndf)

    out = jax.block_until_ready(discriminator_forward(x, w1, b1, w2, b2))
    ref = _reference(x, w1, b1, w2, b2)
    assert out.shape == (B, 1)
    # bf16 MXU operands -> relaxed tolerance vs the f32 reference.
    assert jnp.allclose(out, ref, atol=2e-2, rtol=2e-2), (
        float(jnp.max(jnp.abs(out - ref))))

    # Multi-tile, non-divisible batch: grid = cdiv(300, 256) = 2, the edge
    # block is masked on store and x is never padded/copied.
    B2 = 300
    x2 = jax.random.normal(kx2, (B2, nx), dtype=jnp.float32)
    out2 = jax.block_until_ready(discriminator_forward(x2, w1, b1, w2, b2))
    ref2 = _reference(x2, w1, b1, w2, b2)
    assert out2.shape == (B2, 1)
    assert jnp.allclose(out2, ref2, atol=2e-2, rtol=2e-2), (
        float(jnp.max(jnp.abs(out2 - ref2))))

    # Producer-side bf16 x: fed straight to the kernel (halved x DMA traffic).
    out3 = jax.block_until_ready(
        discriminator_forward(x2.astype(jnp.bfloat16), w1, b1, w2, b2))
    assert out3.shape == (B2, 1)
    assert jnp.allclose(out3, ref2, atol=5e-2, rtol=5e-2), (
        float(jnp.max(jnp.abs(out3 - ref2))))

    # f32 MXU mode for precision-sensitive consumers (same kernel).
    out4 = jax.block_until_ready(
        discriminator_forward(x, w1, b1, w2, b2, mxu_dtype=jnp.float32))
    assert jnp.allclose(out4, ref, atol=2e-2, rtol=2e-2), (
        float(jnp.max(jnp.abs(out4 - ref))))

    print("KERNEL_OK")
</pallas_src>

<mosaic_0001>
module attributes {stable_mosaic.version = 11 : i64} {
  func.func @_discriminator_kernel(%arg0: i32, %arg1: memref<8x32xf32, #tpu.memory_space<vmem>>, %arg2: memref<32x64xbf16, #tpu.memory_space<vmem>>, %arg3: memref<1x64xf32, #tpu.memory_space<vmem>>, %arg4: memref<1x64xf32, #tpu.memory_space<vmem>>, %arg5: memref<1xf32, #tpu.memory_space<smem>>, %arg6: memref<1x8xf32, #tpu.memory_space<vmem>>) attributes {dimension_semantics = [#tpu.dimension_semantics<parallel>], iteration_bounds = array<i64: 1>, scalar_prefetch = 0 : i64, scratch_operands = 0 : i64, tpu.core_type = #tpu.core_type<tc>, window_params = [{transform_indices = @transform_0, window_bounds = array<i64: 8, 32>}, {pipeline_mode = #tpu.pipeline_mode<synchronous>, transform_indices = @transform_1, window_bounds = array<i64: 32, 64>}, {pipeline_mode = #tpu.pipeline_mode<synchronous>, transform_indices = @transform_2, window_bounds = array<i64: 1, 64>}, {pipeline_mode = #tpu.pipeline_mode<synchronous>, transform_indices = @transform_3, window_bounds = array<i64: 1, 64>}, {transform_indices = @transform_4, window_bounds = array<i64: 1>}, {transform_indices = @transform_5, window_bounds = array<i64: 1, 8>}]} {
    %c0 = arith.constant 0 : index
    %c0_0 = arith.constant 0 : index
    %0 = vector.load %arg1[%c0, %c0_0] : memref<8x32xf32, #tpu.memory_space<vmem>>, vector<8x32xf32>
    %1 = arith.truncf %0 : vector<8x32xf32> to vector<8x32xbf16>
    %c0_1 = arith.constant 0 : index
    %c0_2 = arith.constant 0 : index
    %2 = vector.load %arg2[%c0_1, %c0_2] : memref<32x64xbf16, #tpu.memory_space<vmem>>, vector<32x64xbf16>
    %cst = arith.constant dense<0.000000e+00> : vector<8x64xf32>
    %3 = tpu.matmul %1, %2, %cst {dimension_numbers = #tpu.dot_dimension_numbers<[1], [0], [0], [1], [0, 0, 1, 1], [], []>} : vector<8x32xbf16>, vector<32x64xbf16>, vector<8x64xf32> -> vector<8x64xf32>
    %c0_3 = arith.constant 0 : index
    %c0_4 = arith.constant 0 : index
    %4 = vector.load %arg3[%c0_3, %c0_4] : memref<1x64xf32, #tpu.memory_space<vmem>>, vector<1x64xf32>
    %5 = vector.broadcast %4 : vector<1x64xf32> to vector<8x64xf32>
    %6 = arith.addf %3, %5 : vector<8x64xf32>
    %cst_5 = arith.constant 0.000000e+00 : f32
    %7 = vector.broadcast %cst_5 : f32 to vector<8x64xf32>
    %8 = arith.maximumf %6, %7 : vector<8x64xf32>
    %c0_6 = arith.constant 0 : index
    %c0_7 = arith.constant 0 : index
    %9 = vector.load %arg4[%c0_6, %c0_7] : memref<1x64xf32, #tpu.memory_space<vmem>>, vector<1x64xf32>
    %cst_8 = arith.constant dense<0.000000e+00> : vector<1x8xf32>
    %10 = tpu.matmul %9, %8, %cst_8 {dimension_numbers = #tpu.dot_dimension_numbers<[1], [1], [0], [0], [0, 0, 1, 0], [], []>} : vector<1x64xf32>, vector<8x64xf32>, vector<1x8xf32> -> vector<1x8xf32>
    %c0_9 = arith.constant 0 : index
    %11 = memref.load %arg5[%c0_9] : memref<1xf32, #tpu.memory_space<smem>>
    %12 = vector.broadcast %11 : f32 to vector<1x8xf32>
    %13 = arith.addf %10, %12 : vector<1x8xf32>
    %c0_10 = arith.constant 0 : index
    %c0_11 = arith.constant 0 : index
    %14 = vector.load %arg6[%c0_10, %c0_11] : memref<1x8xf32, #tpu.memory_space<vmem>>, vector<1x8xf32>
    tpu.vector_store %arg6[%c0_10, %c0_11], %13 {strides = array<i32>} : memref<1x8xf32, #tpu.memory_space<vmem>>, vector<1x8xf32>,
    return
  }
  func.func @transform_0(%arg0: i32) -> (i32, i32) {
    %c0_i32 = arith.constant 0 : i32
    %c0_i32_0 = arith.constant 0 : i32
    return %arg0, %c0_i32 : i32, i32
  }
  func.func @transform_1(%arg0: i32) -> (i32, i32) {
    %c0_i32 = arith.constant 0 : i32
    %c0_i32_0 = arith.constant 0 : i32
    %c0_i32_1 = arith.constant 0 : i32
    return %c0_i32, %c0_i32_0 : i32, i32
  }
  func.func @transform_2(%arg0: i32) -> (i32, i32) {
    %c0_i32 = arith.constant 0 : i32
    %c0_i32_0 = arith.constant 0 : i32
    %c0_i32_1 = arith.constant 0 : i32
    return %c0_i32, %c0_i32_0 : i32, i32
  }
  func.func @transform_3(%arg0: i32) -> (i32, i32) {
    %c0_i32 = arith.constant 0 : i32
    %c0_i32_0 = arith.constant 0 : i32
    %c0_i32_1 = arith.constant 0 : i32
    return %c0_i32, %c0_i32_0 : i32, i32
  }
  func.func @transform_4(%arg0: i32) -> i32 {
    %c0_i32 = arith.constant 0 : i32
    %c0_i32_0 = arith.constant 0 : i32
    return %c0_i32 : i32
  }
  func.func @transform_5(%arg0: i32) -> (i32, i32) {
    %c0_i32 = arith.constant 0 : i32
    %c0_i32_0 = arith.constant 0 : i32
    return %c0_i32, %arg0 : i32, i32
  }
}

</mosaic_0001>

<llo_original>
// kernel: tpu_custom_call.1
$region0: #{tpu_custom_call.1}
  #allocation0 [shape = 'u32[]', space=smem, size = 0x4, offset = 0x4, fixed_abs, tag = 'smem constant byte address 0x4 - core index']
  #allocation1 [shape = 'u32[144,128]{1,0:T(1,128)}', space=vmem, size = 0x12000, scoped, tag = 'internal scratch']
  #allocation2 [shape = 'f32[1]{0:T(128)S(6)}', space=smem, size = 0x200, scoped, tag = 'scoped memory for tpu_custom_call.1']
  %s0 = inlined_call_operand.hbm [shape: f32[8,32], index: 0, kind: input, shape index: {}]
  %s1 = inlined_call_operand.hbm [shape: bf16[32,64], index: 1, kind: input, shape index: {}]
  %s2 = inlined_call_operand.vmem [shape: f32[1,64], index: 2, kind: input, shape index: {}]
  %s3 = inlined_call_operand.vmem [shape: f32[1,64], index: 3, kind: input, shape index: {}]
  %s4 = inlined_call_operand.<no memory space> [shape: f32[1], index: 4, kind: input, shape index: {}]
  %s5 = inlined_call_operand.hbm [shape: f32[1,8], index: 5, kind: output, shape index: {}]
  %s6 = sld [smem:[#allocation0]]
  $region38: #{tpu_custom_call.1} parent=0
    _
  %s8 = ssub.s32 1, %s6
  %s9 = scalar_select 0, %s8, %s6
  %10 = sst [smem:[#allocation2]] %s4
  $region1: #{tpu_custom_call.1} parent=0
    #allocation3 [shape = 'u8[4096]{0}', space=vmem, size = 0x1000, scoped, tag = 'input window, operand 0, single buffered']
    #allocation4 [shape = 's32[1]{0}', space=sflag, size = 0x4, scoped, tag = 'scoped memory for tpu_custom_call.1']
    #allocation5 [shape = 's32[1]{0}', space=sflag, size = 0x4, scoped, tag = 'scoped memory for tpu_custom_call.1']
    #allocation6 [shape = 'u8[8192]{0}', space=vmem, size = 0x2000, scoped, tag = 'input window, operand 1, single buffered']
    #allocation7 [shape = 's32[1]{0}', space=sflag, size = 0x4, scoped, tag = 'scoped memory for tpu_custom_call.1']
    #allocation8 [shape = 'u8[512]{0}', space=vmem, size = 0x400, scoped, tag = 'output window, operand 0, single buffered']
    %11 = vsyncpa [#allocation4], 0
    %12 = vsyncpa [#allocation7], 0
    %13 = vsyncpa [#allocation5], 0
    // Predicated region
    $region2: #{tpu_custom_call.1} parent=1 // pred_check
      _
    $region3: #{tpu_custom_call.1} parent=1 // pred_check_branch
      %15 = sbr.rel (0) target = $region5
    $region4: #{tpu_custom_call.1} parent=1 // pred_region
      %s17 = ssub.s32 128, 128
      %18 = vsyncadd [#allocation4], %s17
      %s20 = sshll.u32 [#allocation3], 4
      %s21 = int_to_ptr.vmem [resolvable:$true] %s20
      %23 = dma.hbm_to_vmem [thread:$0]  %s0, 128, %s21, [#allocation4]
    $region5: #{tpu_custom_call.1} parent=1 // pred_fallthru
      _
    // Predicated region
    $region6: #{tpu_custom_call.1} parent=1 // pred_check
      _
    $region7: #{tpu_custom_call.1} parent=1 // pred_check_branch
      %25 = sbr.rel (0) target = $region9
    $region8: #{tpu_custom_call.1} parent=1 // pred_region
      %s27 = ssub.s32 256, 256
      %28 = vsyncadd [#allocation7], %s27
      %s29 = sshll.u32 [#allocation6], 4
      %s30 = int_to_ptr.vmem [resolvable:$true] %s29
      %35 = dma.hbm_to_vmem [thread:$0]  %s1, 256, %s30, [#allocation7], 64, 64, 4
    $region9: #{tpu_custom_call.1} parent=1 // pred_fallthru
      _
    // Predicated region
    $region10: #{tpu_custom_call.1} parent=1 // pred_check
      _
    $region11: #{tpu_custom_call.1} parent=1 // pred_check_branch
      %37 = sbr.rel (0) target = $region13
    $region12: #{tpu_custom_call.1} parent=1 // pred_region
      _
    $region13: #{tpu_custom_call.1} parent=1 // pred_fallthru
      _
    // Predicated region
    $region14: #{tpu_custom_call.1} parent=1 // pred_check
      _
    $region15: #{tpu_custom_call.1} parent=1 // pred_check_branch
      %39 = sbr.rel (0) target = $region17
    $region16: #{tpu_custom_call.1} parent=1 // pred_region
      _
    $region17: #{tpu_custom_call.1} parent=1 // pred_fallthru
      _
    // Predicated region
    $region18: #{tpu_custom_call.1} parent=1 // pred_check
      _
    $region19: #{tpu_custom_call.1} parent=1 // pred_check_branch
      %41 = sbr.rel (0) target = $region21
    $region20: #{tpu_custom_call.1} parent=1 // pred_region
      _
    $region21: #{tpu_custom_call.1} parent=1 // pred_fallthru
      _
    // Predicated region
    $region22: #{tpu_custom_call.1} parent=1 // pred_check
      _
    $region23: #{tpu_custom_call.1} parent=1 // pred_check_branch
      %43 = sbr.rel (0) target = $region25
    $region24: #{tpu_custom_call.1} parent=1 // pred_region
      %44 = dma.done [#allocation4], 128
    $region25: #{tpu_custom_call.1} parent=1 // pred_fallthru
      _
    // Predicated region
    $region26: #{tpu_custom_call.1} parent=1 // pred_check
      _
    $region27: #{tpu_custom_call.1} parent=1 // pred_check_branch
      %46 = sbr.rel (0) target = $region29
    $region28: #{tpu_custom_call.1} parent=1 // pred_region
      %47 = dma.done [#allocation7], 256
    $region29: #{tpu_custom_call.1} parent=1 // pred_fallthru
      _
    %v49 = vld [vmem:[#allocation3] sm:$0xff]
    %v50 = vpack.c.bf16 %v49, %v49
    %v51 = vld [vmem:[#allocation6] sm:$0xf]
    %v52 = vld [vmem:[#allocation6 + $0x4] sm:$0xf]
    %v53 = vld [vmem:[#allocation6 + $0x8] sm:$0xf]
    %v54 = vld [vmem:[#allocation6 + $0xc] sm:$0xf]
    %v55 = vld [vmem:[%s2] sm:$0x1]
    %v57 = vlaneseq
    %v58 = vshrl.u32 %v57, 7
    %v59 = vsub.s32 0, %v58
    %v60 = vrot.slane %v55, %v59
    %v66 = vunpack.c.l.b16 %v51
    %v67 = vunpack.c.l.b16 %v52
    %v68 = vunpack.c.l.b16 %v53
    %v69 = vunpack.c.l.b16 %v54
    %v70 = vpack.c.b16 %v67, %v66
    %v71 = vpack.c.b16 %v69, %v68
    %vm74 = vcmask 261120
    %v76 = vsel %vm74, %v50, 0
    %78 = vmatprep.subr.bf16.mxu0 0
    %79 = vmatpush1.bf16.msra.mxu0 %v70
    %80 = vmatprep.subr.bf16.mxu0 0
    %81 = vmatpush1.bf16.msra.mxu0 %v71
    %82 = vmatprep.subr.bf16.mxu0 0
    %83 = vmatpush1.bf16.msra.mxu0 0
    %84 = vmatprep.subr.bf16.mxu0 0
    %85 = vmatpush1.bf16.msra.mxu0 0
    %86 = vmatprep.subr.bf16.mxu0 0
    %87 = vmatpush1.bf16.msra.mxu0 0
    %88 = vmatprep.subr.bf16.mxu0 0
    %89 = vmatpush1.bf16.msra.mxu0 0
    %90 = vmatprep.subr.bf16.mxu0 0
    %91 = vmatpush1.bf16.msra.mxu0 0
    %92 = vmatprep.subr.bf16.mxu0 0
    %93 = vmatpush1.bf16.msra.mxu0 0
    %94 = vmatprep.subr.bf16.mxu0 0
    %95 = vmatpush1.bf16.msra.mxu0 0
    %96 = vmatprep.subr.bf16.mxu0 0
    %97 = vmatpush1.bf16.msra.mxu0 0
    %98 = vmatprep.subr.bf16.mxu0 0
    %99 = vmatpush1.bf16.msra.mxu0 0
    %100 = vmatprep.subr.bf16.mxu0 0
    %101 = vmatpush1.bf16.msra.mxu0 0
    %102 = vmatprep.subr.bf16.mxu0 0
    %103 = vmatpush1.bf16.msra.mxu0 0
    %104 = vmatprep.subr.bf16.mxu0 0
    %105 = vmatpush1.bf16.msra.mxu0 0
    %106 = vmatprep.subr.bf16.mxu0 0
    %107 = vmatpush1.bf16.msra.mxu0 0
    %108 = vmatprep.subr.bf16.mxu0 0
    %109 = vmatpush1.bf16.msra.mxu0 0
    %110 = vmatprep.mubr.bf16.mxu0 0
    %111 = vmatmul.mubr.bf16.gmra.mrb[0].mxu0 %v76
    %v112 = vpop.f32.mrb[0].mxu0
    %v113 = vadd.f32 %v60, %v112
    %v114 = vpop.f32.mrb[0].mxu0
    %v115 = vpop.f32.mrb[0].mxu0
    %v116 = vpop.f32.mrb[0].mxu0
    %117 = vdwg.mxu0
    %v118 = vmax.f32 %v113, 0.0
    %v119 = vld [vmem:[%s3] sm:$0x1]
    %s120 = sld [smem:[#allocation2]]
    %v121 = vstv %s120
    %vm122 = vcmask 523264
    %v124 = vsel %vm122, %v119, 0
    %v127 = vsel %vm122, %v118, 0
    %129 = vmatprep.subr.mxu0 0.0
    %130 = vmatpush1.xpose.msra.mxu0 %v127
    %131 = vmatprep.subr.mxu0 0.0
    %132 = vmatpush1.xpose.msra.mxu0 0.0
    %133 = vmatprep.subr.mxu0 0.0
    %134 = vmatpush1.xpose.msra.mxu0 0.0
    %135 = vmatprep.subr.mxu0 0.0
    %136 = vmatpush1.xpose.msra.mxu0 0.0
    %137 = vmatprep.subr.mxu0 0.0
    %138 = vmatpush1.xpose.msra.mxu0 0.0
    %139 = vmatprep.subr.mxu0 0.0
    %140 = vmatpush1.xpose.msra.mxu0 0.0
    %141 = vmatprep.subr.mxu0 0.0
    %142 = vmatpush1.xpose.msra.mxu0 0.0
    %143 = vmatprep.subr.mxu0 0.0
    %144 = vmatpush1.xpose.msra.mxu0 0.0
    %145 = vmatprep.subr.mxu0 0.0
    %146 = vmatpush1.xpose.msra.mxu0 0.0
    %147 = vmatprep.subr.mxu0 0.0
    %148 = vmatpush1.xpose.msra.mxu0 0.0
    %149 = vmatprep.subr.mxu0 0.0
    %150 = vmatpush1.xpose.msra.mxu0 0.0
    %151 = vmatprep.subr.mxu0 0.0
    %152 = vmatpush1.xpose.msra.mxu0 0.0
    %153 = vmatprep.subr.mxu0 0.0
    %154 = vmatpush1.xpose.msra.mxu0 0.0
    %155 = vmatprep.subr.mxu0 0.0
    %156 = vmatpush1.xpose.msra.mxu0 0.0
    %157 = vmatprep.subr.mxu0 0.0
    %158 = vmatpush1.xpose.msra.mxu0 0.0
    %159 = vmatprep.subr.mxu0 0.0
    %160 = vmatpush1.xpose.msra.mxu0 0.0
    %161 = vmatprep.subr.mxu0 0.0
    %162 = vmatpush1.xpose.msra.mxu0 0.0
    %163 = vmatprep.subr.mxu0 0.0
    %164 = vmatpush1.xpose.msra.mxu0 0.0
    %165 = vmatprep.subr.mxu0 0.0
    %166 = vmatpush1.xpose.msra.mxu0 0.0
    %167 = vmatprep.subr.mxu0 0.0
    %168 = vmatpush1.xpose.msra.mxu0 0.0
    %169 = vmatprep.subr.mxu0 0.0
    %170 = vmatpush1.xpose.msra.mxu0 0.0
    %171 = vmatprep.subr.mxu0 0.0
    %172 = vmatpush1.xpose.msra.mxu0 0.0
    %173 = vmatprep.subr.mxu0 0.0
    %174 = vmatpush1.xpose.msra.mxu0 0.0
    %175 = vmatprep.subr.mxu0 0.0
    %176 = vmatpush1.xpose.msra.mxu0 0.0
    %177 = vmatprep.subr.mxu0 0.0
    %178 = vmatpush1.xpose.msra.mxu0 0.0
    %179 = vmatprep.subr.mxu0 0.0
    %180 = vmatpush1.xpose.msra.mxu0 0.0
    %181 = vmatprep.subr.mxu0 0.0
    %182 = vmatpush1.xpose.msra.mxu0 0.0
    %183 = vmatprep.subr.mxu0 0.0
    %184 = vmatpush1.xpose.msra.mxu0 0.0
    %185 = vmatprep.subr.mxu0 0.0
    %186 = vmatpush1.xpose.msra.mxu0 0.0
    %187 = vmatprep.subr.mxu0 0.0
    %188 = vmatpush1.xpose.msra.mxu0 0.0
    %189 = vmatprep.subr.mxu0 0.0
    %190 = vmatpush1.xpose.msra.mxu0 0.0
    %191 = vmatprep.subr.mxu0 0.0
    %192 = vmatpush1.xpose.msra.mxu0 0.0
    %193 = vmatprep.mubr.f32.mxu0 0.0
    %194 = vmatmul.mubr.f32.gmra.mrb[0].mxu0 %v124
    %v195 = vpop.f32.mrb[0].mxu0
    %v196 = vadd.f32 %v121, %v195
    %v197 = vpop.f32.mrb[0].mxu0
    %198 = vdwg.mxu0
    %vm199 = vcmask 57344
    %200 = vst.msk [vmem:[#allocation8] sm:$0x1] %vm199, %v196
    // Predicated region
    $region30: #{tpu_custom_call.1} parent=1 // pred_check
      _
    $region31: #{tpu_custom_call.1} parent=1 // pred_check_branch
      %202 = sbr.rel (0) target = $region33
    $region32: #{tpu_custom_call.1} parent=1 // pred_region
      %s204 = ssub.s32 16, 16
      %205 = vsyncadd [#allocation5], %s204
      %s207 = sshll.u32 [#allocation8], 4
      %s208 = int_to_ptr.vmem [resolvable:$true] %s207
      %210 = dma.vmem_to_hbm [thread:$0]  %s208, 16, %s5, [#allocation5]
    $region33: #{tpu_custom_call.1} parent=1 // pred_fallthru
      _
    // Predicated region
    $region34: #{tpu_custom_call.1} parent=1 // pred_check
      _
    $region35: #{tpu_custom_call.1} parent=1 // pred_check_branch
      %212 = sbr.rel (0) target = $region37
    $region36: #{tpu_custom_call.1} parent=1 // pred_region
      %213 = dma.done [#allocation5], 16
    $region37: #{tpu_custom_call.1} parent=1 // pred_fallthru
      _
    %214 = vsyncpa [#allocation4], 1
    %215 = vsyncpa [#allocation7], 1
    %216 = vsyncpa [#allocation5], 1

</llo_original>
